<compile_context>
chip_gen: v6e
topology: v6e:2x2x1
jax: 0.10.0
libtpu: 0.0.40
codegen_flags: <defaults>
</compile_context>

<pallas_src>
import functools

import jax
import jax.numpy as jnp
from jax.experimental import pallas as pl
from jax.experimental.pallas import tpu as pltpu

LANE = 128


def _round_up(n, m):
    return (n + m - 1) // m * m


def ffn_kernel(x_ref, w1_ref, b1_ref, w2_ref, b2_ref, o_ref):
    # x is f32 in HBM/VMEM; cast to the matmul dtype on the VPU just before the MXU.
    x = x_ref[...].astype(w1_ref.dtype)
    # Layer 1: [tb, F] @ [F, Hp], f32 accumulation; bias + ReLU in f32.
    h = jnp.dot(x, w1_ref[...], preferred_element_type=jnp.float32) + b1_ref[...]
    h = jnp.maximum(h, 0.0)
    # Layer 2: [tb, Hp] @ [Hp, Lp], f32 accumulation, f32 epilogue.
    logits = jnp.dot(h.astype(w2_ref.dtype), w2_ref[...],
                     preferred_element_type=jnp.float32) + b2_ref[...]
    # Numerically stable log_softmax on the lane-padded (Lp=128) class axis.
    # Padded class columns carry a -1e30 bias -> exp() underflows to exactly 0.
    m = jnp.max(logits, axis=-1, keepdims=True)
    z = logits - m
    lse = jnp.log(jnp.sum(jnp.exp(z), axis=-1, keepdims=True))
    logp = z - lse
    # Store only the real class columns; the output array last dim == num_classes.
    o_ref[...] = logp[:, :o_ref.shape[-1]].astype(o_ref.dtype)


def prepare_ffn_params(w1, b1, w2, b2, *, matmul_dtype=jnp.float32):
    """One-time parameter prep (hoisted out of the per-call path).

    PyTorch Linear layout in:  w1 [H, F], b1 [H], w2 [L, H], b2 [L].
    Returns lane-padded, pre-transposed kernel operands:
      w1t [F, Hp], b1r [1, Hp], w2t [Hp, Lp], b2r [1, Lp], Hp/Lp = round_up(.., 128).
    Padded hidden columns are zero (ReLU(0)=0 and matching W2 rows are zero); padded
    class columns get a -1e30 bias so log_softmax ignores them.
    """
    H, F = w1.shape
    L = w2.shape[0]
    Hp = _round_up(H, LANE)
    Lp = _round_up(L, LANE)

    w1t = jnp.zeros((F, Hp), matmul_dtype).at[:, :H].set(w1.T.astype(matmul_dtype))
    b1r = jnp.zeros((1, Hp), jnp.float32).at[:, :H].set(b1.astype(jnp.float32))
    w2t = jnp.zeros((Hp, Lp), matmul_dtype).at[:H, :L].set(w2.T.astype(matmul_dtype))
    b2r = jnp.full((1, Lp), -1e30, jnp.float32).at[:, :L].set(b2.astype(jnp.float32))
    return (w1t, b1r, w2t, b2r), L


@functools.partial(jax.jit, static_argnames=("num_classes", "tile_b"))
def feedforward_pallas(x, w1t, b1r, w2t, b2r, *, num_classes, tile_b=2048):
    """x: [B, F] f32 (kept f32 in HBM). Returns log-probs [B, num_classes] f32."""
    B, F = x.shape
    Hp = w1t.shape[1]
    Lp = w2t.shape[1]
    matmul_dtype = w1t.dtype
    elt_bytes = jnp.dtype(matmul_dtype).itemsize

    # Batch tile: bf16 packs 16 sublanes per vreg, f32 packs 8.
    sub = 16 if matmul_dtype == jnp.bfloat16 else 8
    # Cap tb so the grid has >= 2 steps when the batch is big enough (v7x megacore),
    # while keeping tb large enough to amortize per-step overhead.
    if B > 2 * sub:
        tb_cap = _round_up(pl.cdiv(B, 2), sub)
    else:
        tb_cap = _round_up(B, sub)
    tb = max(sub, min(_round_up(tile_b, sub), tb_cap))
    grid = (pl.cdiv(B, tb),)  # ragged last block is clipped by Pallas; no host pad

    # VMEM budget: double-buffered x/out tiles + resident weights + intermediates.
    weights_bytes = (F * Hp + Hp * Lp) * elt_bytes + (Hp + Lp) * 4
    io_bytes = 2 * tb * F * 4 + 2 * tb * num_classes * 4
    scratch_bytes = 4 * tb * max(Hp, Lp) * 4  # h, casts, logits intermediates
    vmem_limit = min(
        64 * 1024 * 1024,  # v7x physical ceiling; plenty on v5e/v6e too
        max(16 * 1024 * 1024,
            _round_up(weights_bytes + io_bytes + scratch_bytes + (2 << 20), 1 << 20)))

    cost = pl.CostEstimate(
        flops=2 * B * (F * Hp + Hp * Lp),
        transcendentals=B * (Lp + 1),  # exp per (padded) logit + log per row
        bytes_accessed=B * F * 4 + (F * Hp + Hp * Lp) * elt_bytes
        + (Hp + Lp) * 4 + B * num_classes * 4,
    )

    return pl.pallas_call(
        ffn_kernel,
        out_shape=jax.ShapeDtypeStruct((B, num_classes), jnp.float32),
        grid_spec=pltpu.PrefetchScalarGridSpec(
            num_scalar_prefetch=0,
            grid=grid,
            in_specs=[
                pl.BlockSpec((tb, F), lambda i: (i, 0)),    # x: tiled along batch, f32
                pl.BlockSpec((F, Hp), lambda i: (0, 0)),    # weights: resident
                pl.BlockSpec((1, Hp), lambda i: (0, 0)),
                pl.BlockSpec((Hp, Lp), lambda i: (0, 0)),
                pl.BlockSpec((1, Lp), lambda i: (0, 0)),
            ],
            # Last dim == full array dim (num_classes) -> legal narrow block, and the
            # only HBM output bytes written are the real classes.
            out_specs=pl.BlockSpec((tb, num_classes), lambda i: (i, 0)),
        ),
        compiler_params=pltpu.CompilerParams(
            dimension_semantics=("parallel",),  # megacore split on v7x
            vmem_limit_bytes=vmem_limit,
        ),
        cost_estimate=cost,
    )(x, w1t, b1r, w2t, b2r)


def feedforward_ref(x, w1, b1, w2, b2):
    h = jnp.maximum(x @ w1.T + b1, 0.0)
    logits = h @ w2.T + b2
    return jax.nn.log_softmax(logits, axis=-1)


if __name__ == "__main__":
    # Module hyperparameters: len(alphabets_99)=16, max_length=8 -> in_features=128,
    # hidden_size=32, len(languages)=8.
    n_alpha, max_len = 16, 8
    in_features = n_alpha * max_len          # 128
    hidden_size = 32
    n_languages = 8

    key = jax.random.PRNGKey(0)
    kx, k1, k2, k3, k4, kx2 = jax.random.split(key, 6)

    w1 = jax.random.normal(k1, (hidden_size, in_features), jnp.float32) * 0.05
    b1 = jax.random.normal(k2, (hidden_size,), jnp.float32) * 0.05
    w2 = jax.random.normal(k3, (n_languages, hidden_size), jnp.float32) * 0.05
    b2 = jax.random.normal(k4, (n_languages,), jnp.float32) * 0.05

    # One-time prep (transpose + lane-pad), hoisted out of the call path.
    params_f32, L = prepare_ffn_params(w1, b1, w2, b2, matmul_dtype=jnp.float32)
    params_f32 = jax.block_until_ready(params_f32)

    # --- small batch (module-scale), f32 matmuls, grid=(1,) --------------------
    x_small = jax.random.normal(kx, (8, in_features), jnp.float32)
    out_small = feedforward_pallas(x_small, *params_f32, num_classes=L)
    out_small = jax.block_until_ready(out_small)
    ref_small = feedforward_ref(x_small, w1, b1, w2, b2)
    assert out_small.shape == (8, n_languages)
    assert jnp.allclose(out_small, ref_small, atol=1e-5, rtol=1e-5), "f32 small-batch mismatch"

    # --- larger ragged batch: >=2 grid steps, ragged last block, no host pad ---
    x_big = jax.random.normal(kx2, (300, in_features), jnp.float32)
    out_big = feedforward_pallas(x_big, *params_f32, num_classes=L)
    out_big = jax.block_until_ready(out_big)
    ref_big = feedforward_ref(x_big, w1, b1, w2, b2)
    assert out_big.shape == (300, n_languages)
    assert jnp.allclose(out_big, ref_big, atol=1e-5, rtol=1e-5), "f32 big-batch mismatch"

    # --- bf16 weights (bandwidth win on v6e/v7x); x stays f32 in HBM, cast in-kernel
    params_bf16, _ = prepare_ffn_params(w1, b1, w2, b2, matmul_dtype=jnp.bfloat16)
    params_bf16 = jax.block_until_ready(params_bf16)
    out_bf16 = feedforward_pallas(x_big, *params_bf16, num_classes=L)
    out_bf16 = jax.block_until_ready(out_bf16)
    assert out_bf16.shape == (300, n_languages)
    assert jnp.allclose(out_bf16, ref_big, atol=5e-2, rtol=5e-2), "bf16 mismatch"

    # TODO(synk): train_model/evaluate (Adam loop, nll_loss, checkpoint I/O) are host-side
    # training utilities, not part of the forward pass, and are not translated to Pallas.
    print("KERNEL_OK")
</pallas_src>

<mosaic_0001>
module attributes {stable_mosaic.version = 11 : i64} {
  func.func @ffn_kernel(%arg0: i32, %arg1: memref<8x128xf32, #tpu.memory_space<vmem>>, %arg2: memref<128x128xf32, #tpu.memory_space<vmem>>, %arg3: memref<1x128xf32, #tpu.memory_space<vmem>>, %arg4: memref<128x128xf32, #tpu.memory_space<vmem>>, %arg5: memref<1x128xf32, #tpu.memory_space<vmem>>, %arg6: memref<8x8xf32, #tpu.memory_space<vmem>>) attributes {dimension_semantics = [#tpu.dimension_semantics<parallel>], iteration_bounds = array<i64: 1>, scalar_prefetch = 0 : i64, scratch_operands = 0 : i64, tpu.core_type = #tpu.core_type<tc>, window_params = [{transform_indices = @transform_0, window_bounds = array<i64: 8, 128>}, {pipeline_mode = #tpu.pipeline_mode<synchronous>, transform_indices = @transform_1, window_bounds = array<i64: 128, 128>}, {pipeline_mode = #tpu.pipeline_mode<synchronous>, transform_indices = @transform_2, window_bounds = array<i64: 1, 128>}, {pipeline_mode = #tpu.pipeline_mode<synchronous>, transform_indices = @transform_3, window_bounds = array<i64: 128, 128>}, {pipeline_mode = #tpu.pipeline_mode<synchronous>, transform_indices = @transform_4, window_bounds = array<i64: 1, 128>}, {transform_indices = @transform_5, window_bounds = array<i64: 8, 8>}]} {
    %c0 = arith.constant 0 : index
    %c0_0 = arith.constant 0 : index
    %0 = vector.load %arg1[%c0, %c0_0] : memref<8x128xf32, #tpu.memory_space<vmem>>, vector<8x128xf32>
    %c0_1 = arith.constant 0 : index
    %c0_2 = arith.constant 0 : index
    %1 = vector.load %arg2[%c0_1, %c0_2] : memref<128x128xf32, #tpu.memory_space<vmem>>, vector<128x128xf32>
    %cst = arith.constant dense<0.000000e+00> : vector<8x128xf32>
    %2 = tpu.matmul %0, %1, %cst {dimension_numbers = #tpu.dot_dimension_numbers<[1], [0], [0], [1], [0, 0, 1, 1], [], []>} : vector<8x128xf32>, vector<128x128xf32>, vector<8x128xf32> -> vector<8x128xf32>
    %c0_3 = arith.constant 0 : index
    %c0_4 = arith.constant 0 : index
    %3 = vector.load %arg3[%c0_3, %c0_4] : memref<1x128xf32, #tpu.memory_space<vmem>>, vector<1x128xf32>
    %4 = vector.broadcast %3 : vector<1x128xf32> to vector<8x128xf32>
    %5 = arith.addf %2, %4 : vector<8x128xf32>
    %cst_5 = arith.constant 0.000000e+00 : f32
    %6 = vector.broadcast %cst_5 : f32 to vector<8x128xf32>
    %7 = arith.maximumf %5, %6 : vector<8x128xf32>
    %c0_6 = arith.constant 0 : index
    %c0_7 = arith.constant 0 : index
    %8 = vector.load %arg4[%c0_6, %c0_7] : memref<128x128xf32, #tpu.memory_space<vmem>>, vector<128x128xf32>
    %cst_8 = arith.constant dense<0.000000e+00> : vector<8x128xf32>
    %9 = tpu.matmul %7, %8, %cst_8 {dimension_numbers = #tpu.dot_dimension_numbers<[1], [0], [0], [1], [0, 0, 1, 1], [], []>} : vector<8x128xf32>, vector<128x128xf32>, vector<8x128xf32> -> vector<8x128xf32>
    %c0_9 = arith.constant 0 : index
    %c0_10 = arith.constant 0 : index
    %10 = vector.load %arg5[%c0_9, %c0_10] : memref<1x128xf32, #tpu.memory_space<vmem>>, vector<1x128xf32>
    %11 = vector.broadcast %10 : vector<1x128xf32> to vector<8x128xf32>
    %12 = arith.addf %9, %11 : vector<8x128xf32>
    %cst_11 = arith.constant dense<0xFF800000> : vector<8xf32>
    %13 = vector.multi_reduction <maximumf>, %12, %cst_11 [1] : vector<8x128xf32> to vector<8xf32>
    %14 = vector.shape_cast %13 : vector<8xf32> to vector<8x1xf32>
    %15 = vector.broadcast %14 : vector<8x1xf32> to vector<8x128xf32>
    %16 = arith.subf %12, %15 : vector<8x128xf32>
    %17 = math.exp %16 : vector<8x128xf32>
    %cst_12 = arith.constant dense<0.000000e+00> : vector<8xf32>
    %18 = vector.multi_reduction <add>, %17, %cst_12 [1] : vector<8x128xf32> to vector<8xf32>
    %19 = vector.shape_cast %18 : vector<8xf32> to vector<8x1xf32>
    %20 = math.log %19 : vector<8x1xf32>
    %21 = vector.broadcast %20 : vector<8x1xf32> to vector<8x128xf32>
    %22 = arith.subf %16, %21 : vector<8x128xf32>
    %23 = vector.extract_strided_slice %22 {offsets = [0, 0], sizes = [8, 8], strides = [1, 1]} : vector<8x128xf32> to vector<8x8xf32>
    %c0_13 = arith.constant 0 : index
    %c0_14 = arith.constant 0 : index
    %24 = vector.load %arg6[%c0_13, %c0_14] : memref<8x8xf32, #tpu.memory_space<vmem>>, vector<8x8xf32>
    tpu.vector_store %arg6[%c0_13, %c0_14], %23 {strides = array<i32>} : memref<8x8xf32, #tpu.memory_space<vmem>>, vector<8x8xf32>,
    return
  }
  func.func @transform_0(%arg0: i32) -> (i32, i32) {
    %c0_i32 = arith.constant 0 : i32
    %c0_i32_0 = arith.constant 0 : i32
    return %arg0, %c0_i32 : i32, i32
  }
  func.func @transform_1(%arg0: i32) -> (i32, i32) {
    %c0_i32 = arith.constant 0 : i32
    %c0_i32_0 = arith.constant 0 : i32
    %c0_i32_1 = arith.constant 0 : i32
    return %c0_i32, %c0_i32_0 : i32, i32
  }
  func.func @transform_2(%arg0: i32) -> (i32, i32) {
    %c0_i32 = arith.constant 0 : i32
    %c0_i32_0 = arith.constant 0 : i32
    %c0_i32_1 = arith.constant 0 : i32
    return %c0_i32, %c0_i32_0 : i32, i32
  }
  func.func @transform_3(%arg0: i32) -> (i32, i32) {
    %c0_i32 = arith.constant 0 : i32
    %c0_i32_0 = arith.constant 0 : i32
    %c0_i32_1 = arith.constant 0 : i32
    return %c0_i32, %c0_i32_0 : i32, i32
  }
  func.func @transform_4(%arg0: i32) -> (i32, i32) {
    %c0_i32 = arith.constant 0 : i32
    %c0_i32_0 = arith.constant 0 : i32
    %c0_i32_1 = arith.constant 0 : i32
    return %c0_i32, %c0_i32_0 : i32, i32
  }
  func.func @transform_5(%arg0: i32) -> (i32, i32) {
    %c0_i32 = arith.constant 0 : i32
    %c0_i32_0 = arith.constant 0 : i32
    return %arg0, %c0_i32 : i32, i32
  }
}

</mosaic_0001>

<llo_original>
// kernel: feedforward_pallas.1
$region0: #{feedforward_pallas.1}
  #allocation0 [shape = 'u32[]', space=smem, size = 0x4, offset = 0x4, fixed_abs, tag = 'smem constant byte address 0x4 - core index']
  #allocation1 [shape = 'u32[144,128]{1,0:T(1,128)}', space=vmem, size = 0x12000, scoped, tag = 'internal scratch']
  %s0 = inlined_call_operand.hbm [shape: f32[8,128], index: 0, kind: input, shape index: {}]
  %s1 = inlined_call_operand.hbm [shape: f32[128,128], index: 1, kind: input, shape index: {}]
  %s2 = inlined_call_operand.vmem [shape: f32[1,128], index: 2, kind: input, shape index: {}]
  %s3 = inlined_call_operand.hbm [shape: f32[128,128], index: 3, kind: input, shape index: {}]
  %s4 = inlined_call_operand.vmem [shape: f32[1,128], index: 4, kind: input, shape index: {}]
  %s5 = inlined_call_operand.hbm [shape: f32[8,8], index: 5, kind: output, shape index: {}]
  %s6 = sld [smem:[#allocation0]]
  $region42: #{feedforward_pallas.1} parent=0
    _
  %s8 = ssub.s32 1, %s6
  %s9 = scalar_select 0, %s8, %s6
  $region1: #{feedforward_pallas.1} parent=0
    #allocation2 [shape = 'u8[4096]{0}', space=vmem, size = 0x1000, scoped, tag = 'input window, operand 0, single buffered']
    #allocation3 [shape = 's32[1]{0}', space=sflag, size = 0x4, scoped, tag = 'scoped memory for feedforward_pallas.1']
    #allocation4 [shape = 's32[1]{0}', space=sflag, size = 0x4, scoped, tag = 'scoped memory for feedforward_pallas.1']
    #allocation5 [shape = 'u8[65536]{0}', space=vmem, size = 0x10000, scoped, tag = 'input window, operand 1, single buffered']
    #allocation6 [shape = 's32[1]{0}', space=sflag, size = 0x4, scoped, tag = 'scoped memory for feedforward_pallas.1']
    #allocation7 [shape = 'u8[65536]{0}', space=vmem, size = 0x10000, scoped, tag = 'input window, operand 3, single buffered']
    #allocation8 [shape = 'u8[4096]{0}', space=vmem, size = 0x1000, scoped, tag = 'output window, operand 0, single buffered']
    %10 = vsyncpa [#allocation3], 0
    %11 = vsyncpa [#allocation6], 0
    %12 = vsyncpa [#allocation4], 0
    // Predicated region
    $region2: #{feedforward_pallas.1} parent=1 // pred_check
      _
    $region3: #{feedforward_pallas.1} parent=1 // pred_check_branch
      %14 = sbr.rel (0) target = $region5
    $region4: #{feedforward_pallas.1} parent=1 // pred_region
      %s16 = ssub.s32 128, 128
      %17 = vsyncadd [#allocation3], %s16
      %s19 = sshll.u32 [#allocation2], 4
      %s20 = int_to_ptr.vmem [resolvable:$true] %s19
      %22 = dma.hbm_to_vmem [thread:$0]  %s0, 128, %s20, [#allocation3]
    $region5: #{feedforward_pallas.1} parent=1 // pred_fallthru
      _
    // Predicated region
    $region6: #{feedforward_pallas.1} parent=1 // pred_check
      _
    $region7: #{feedforward_pallas.1} parent=1 // pred_check_branch
      %24 = sbr.rel (0) target = $region9
    $region8: #{feedforward_pallas.1} parent=1 // pred_region
      %s26 = ssub.s32 2048, 2048
      %27 = vsyncadd [#allocation6], %s26
      %s28 = sshll.u32 [#allocation5], 4
      %s29 = int_to_ptr.vmem [resolvable:$true] %s28
      %34 = dma.hbm_to_vmem [thread:$0]  %s1, 2048, %s29, [#allocation6], 128, 128, 8
    $region9: #{feedforward_pallas.1} parent=1 // pred_fallthru
      _
    // Predicated region
    $region10: #{feedforward_pallas.1} parent=1 // pred_check
      _
    $region11: #{feedforward_pallas.1} parent=1 // pred_check_branch
      %36 = sbr.rel (0) target = $region13
    $region12: #{feedforward_pallas.1} parent=1 // pred_region
      _
    $region13: #{feedforward_pallas.1} parent=1 // pred_fallthru
      _
    // Predicated region
    $region14: #{feedforward_pallas.1} parent=1 // pred_check
      _
    $region15: #{feedforward_pallas.1} parent=1 // pred_check_branch
      %38 = sbr.rel (0) target = $region17
    $region16: #{feedforward_pallas.1} parent=1 // pred_region
      %s40 = ssub.s32 2048, 2048
      %41 = vsyncadd [#allocation6], %s40
      %s42 = sshll.u32 [#allocation7], 4
      %s43 = int_to_ptr.vmem [resolvable:$true] %s42
      %48 = dma.hbm_to_vmem [thread:$0]  %s3, 2048, %s43, [#allocation6], 128, 128, 8
    $region17: #{feedforward_pallas.1} parent=1 // pred_fallthru
      _
    // Predicated region
    $region18: #{feedforward_pallas.1} parent=1 // pred_check
      _
    $region19: #{feedforward_pallas.1} parent=1 // pred_check_branch
      %50 = sbr.rel (0) target = $region21
    $region20: #{feedforward_pallas.1} parent=1 // pred_region
      _
    $region21: #{feedforward_pallas.1} parent=1 // pred_fallthru
      _
    // Predicated region
    $region22: #{feedforward_pallas.1} parent=1 // pred_check
      _
    $region23: #{feedforward_pallas.1} parent=1 // pred_check_branch
      %52 = sbr.rel (0) target = $region25
    $region24: #{feedforward_pallas.1} parent=1 // pred_region
      %53 = dma.done [#allocation3], 128
    $region25: #{feedforward_pallas.1} parent=1 // pred_fallthru
      _
    // Predicated region
    $region26: #{feedforward_pallas.1} parent=1 // pred_check
      _
    $region27: #{feedforward_pallas.1} parent=1 // pred_check_branch
      %55 = sbr.rel (0) target = $region29
    $region28: #{feedforward_pallas.1} parent=1 // pred_region
      %56 = dma.done [#allocation6], 2048
    $region29: #{feedforward_pallas.1} parent=1 // pred_fallthru
      _
    // Predicated region
    $region30: #{feedforward_pallas.1} parent=1 // pred_check
      _
    $region31: #{feedforward_pallas.1} parent=1 // pred_check_branch
      %58 = sbr.rel (0) target = $region33
    $region32: #{feedforward_pallas.1} parent=1 // pred_region
      %59 = dma.done [#allocation6], 2048
    $region33: #{feedforward_pallas.1} parent=1 // pred_fallthru
      _
    %v60 = vld [vmem:[#allocation2] sm:$0xff]
    %v61 = vld [vmem:[#allocation5] sm:$0xff]
    %v62 = vld [vmem:[#allocation5 + $0x8] sm:$0xff]
    %v63 = vld [vmem:[#allocation5 + $0x10] sm:$0xff]
    %v64 = vld [vmem:[#allocation5 + $0x18] sm:$0xff]
    %v65 = vld [vmem:[#allocation5 + $0x20] sm:$0xff]
    %v66 = vld [vmem:[#allocation5 + $0x28] sm:$0xff]
    %v67 = vld [vmem:[#allocation5 + $0x30] sm:$0xff]
    %v68 = vld [vmem:[#allocation5 + $0x38] sm:$0xff]
    %v69 = vld [vmem:[#allocation5 + $0x40] sm:$0xff]
    %v70 = vld [vmem:[#allocation5 + $0x48] sm:$0xff]
    %v71 = vld [vmem:[#allocation5 + $0x50] sm:$0xff]
    %v72 = vld [vmem:[#allocation5 + $0x58] sm:$0xff]
    %v73 = vld [vmem:[#allocation5 + $0x60] sm:$0xff]
    %v74 = vld [vmem:[#allocation5 + $0x68] sm:$0xff]
    %v75 = vld [vmem:[#allocation5 + $0x70] sm:$0xff]
    %v76 = vld [vmem:[#allocation5 + $0x78] sm:$0xff]
    %v77 = vld [vmem:[%s2] sm:$0x1]
    %v79 = vlaneseq
    %v80 = vshrl.u32 %v79, 7
    %v81 = vsub.s32 0, %v80
    %v82 = vrot.slane %v77, %v81
    %84 = vmatprep.subr.mxu0 0.0
    %85 = vmatpush1.msra.mxu0 %v76
    %86 = vmatprep.subr.mxu0 0.0
    %87 = vmatpush1.msra.mxu0 %v75
    %88 = vmatprep.subr.mxu0 0.0
    %89 = vmatpush1.msra.mxu0 %v74
    %90 = vmatprep.subr.mxu0 0.0
    %91 = vmatpush1.msra.mxu0 %v73
    %92 = vmatprep.subr.mxu0 0.0
    %93 = vmatpush1.msra.mxu0 %v72
    %94 = vmatprep.subr.mxu0 0.0
    %95 = vmatpush1.msra.mxu0 %v71
    %96 = vmatprep.subr.mxu0 0.0
    %97 = vmatpush1.msra.mxu0 %v70
    %98 = vmatprep.subr.mxu0 0.0
    %99 = vmatpush1.msra.mxu0 %v69
    %100 = vmatprep.subr.mxu0 0.0
    %101 = vmatpush1.msra.mxu0 %v68
    %102 = vmatprep.subr.mxu0 0.0
    %103 = vmatpush1.msra.mxu0 %v67
    %104 = vmatprep.subr.mxu0 0.0
    %105 = vmatpush1.msra.mxu0 %v66
    %106 = vmatprep.subr.mxu0 0.0
    %107 = vmatpush1.msra.mxu0 %v65
    %108 = vmatprep.subr.mxu0 0.0
    %109 = vmatpush1.msra.mxu0 %v64
    %110 = vmatprep.subr.mxu0 0.0
    %111 = vmatpush1.msra.mxu0 %v63
    %112 = vmatprep.subr.mxu0 0.0
    %113 = vmatpush1.msra.mxu0 %v62
    %114 = vmatprep.subr.mxu0 0.0
    %115 = vmatpush1.msra.mxu0 %v61
    %116 = vmatprep.subr.mxu0 0.0
    %117 = vmatpush2.msra.mxu0 0.0
    %118 = vmatprep.subr.mxu0 0.0
    %119 = vmatpush2.msra.mxu0 0.0
    %120 = vmatprep.subr.mxu0 0.0
    %121 = vmatpush2.msra.mxu0 0.0
    %122 = vmatprep.subr.mxu0 0.0
    %123 = vmatpush2.msra.mxu0 0.0
    %124 = vmatprep.subr.mxu0 0.0
    %125 = vmatpush2.msra.mxu0 0.0
    %126 = vmatprep.subr.mxu0 0.0
    %127 = vmatpush2.msra.mxu0 0.0
    %128 = vmatprep.subr.mxu0 0.0
    %129 = vmatpush2.msra.mxu0 0.0
    %130 = vmatprep.subr.mxu0 0.0
    %131 = vmatpush2.msra.mxu0 0.0
    %132 = vmatprep.subr.mxu0 0.0
    %133 = vmatpush2.msra.mxu0 0.0
    %134 = vmatprep.subr.mxu0 0.0
    %135 = vmatpush2.msra.mxu0 0.0
    %136 = vmatprep.subr.mxu0 0.0
    %137 = vmatpush2.msra.mxu0 0.0
    %138 = vmatprep.subr.mxu0 0.0
    %139 = vmatpush2.msra.mxu0 0.0
    %140 = vmatprep.subr.mxu0 0.0
    %141 = vmatpush2.msra.mxu0 0.0
    %142 = vmatprep.subr.mxu0 0.0
    %143 = vmatpush2.msra.mxu0 0.0
    %144 = vmatprep.subr.mxu0 0.0
    %145 = vmatpush2.msra.mxu0 0.0
    %146 = vmatprep.subr.mxu0 0.0
    %147 = vmatpush2.msra.mxu0 0.0
    %148 = vmatprep.mubr.f32.mxu0 0.0
    %149 = vmatmul.mubr.f32.gmra.mxu0 %v60
    %v150 = vpop.f32.mrf.mxu0
    %v151 = vadd.f32 %v82, %v150
    %v152 = vpop.f32.mrf.mxu0
    %153 = vdwg.mxu0
    %v154 = vmax.f32 %v151, 0.0
    %v155 = vld [vmem:[#allocation7] sm:$0xff]
    %v156 = vld [vmem:[#allocation7 + $0x8] sm:$0xff]
    %v157 = vld [vmem:[#allocation7 + $0x10] sm:$0xff]
    %v158 = vld [vmem:[#allocation7 + $0x18] sm:$0xff]
    %v159 = vld [vmem:[#allocation7 + $0x20] sm:$0xff]
    %v160 = vld [vmem:[#allocation7 + $0x28] sm:$0xff]
    %v161 = vld [vmem:[#allocation7 + $0x30] sm:$0xff]
    %v162 = vld [vmem:[#allocation7 + $0x38] sm:$0xff]
    %v163 = vld [vmem:[#allocation7 + $0x40] sm:$0xff]
    %v164 = vld [vmem:[#allocation7 + $0x48] sm:$0xff]
    %v165 = vld [vmem:[#allocation7 + $0x50] sm:$0xff]
    %v166 = vld [vmem:[#allocation7 + $0x58] sm:$0xff]
    %v167 = vld [vmem:[#allocation7 + $0x60] sm:$0xff]
    %v168 = vld [vmem:[#allocation7 + $0x68] sm:$0xff]
    %v169 = vld [vmem:[#allocation7 + $0x70] sm:$0xff]
    %v170 = vld [vmem:[#allocation7 + $0x78] sm:$0xff]
    %v171 = vld [vmem:[%s4] sm:$0x1]
    %v173 = vlaneseq
    %v174 = vshrl.u32 %v173, 7
    %v175 = vsub.s32 0, %v174
    %v176 = vrot.slane %v171, %v175
    %178 = vmatprep.subr.mxu0 0.0
    %179 = vmatpush1.msra.mxu0 %v170
    %180 = vmatprep.subr.mxu0 0.0
    %181 = vmatpush1.msra.mxu0 %v169
    %182 = vmatprep.subr.mxu0 0.0
    %183 = vmatpush1.msra.mxu0 %v168
    %184 = vmatprep.subr.mxu0 0.0
    %185 = vmatpush1.msra.mxu0 %v167
    %186 = vmatprep.subr.mxu0 0.0
    %187 = vmatpush1.msra.mxu0 %v166
    %188 = vmatprep.subr.mxu0 0.0
    %189 = vmatpush1.msra.mxu0 %v165
    %190 = vmatprep.subr.mxu0 0.0
    %191 = vmatpush1.msra.mxu0 %v164
    %192 = vmatprep.subr.mxu0 0.0
    %193 = vmatpush1.msra.mxu0 %v163
    %194 = vmatprep.subr.mxu0 0.0
    %195 = vmatpush1.msra.mxu0 %v162
    %196 = vmatprep.subr.mxu0 0.0
    %197 = vmatpush1.msra.mxu0 %v161
    %198 = vmatprep.subr.mxu0 0.0
    %199 = vmatpush1.msra.mxu0 %v160
    %200 = vmatprep.subr.mxu0 0.0
    %201 = vmatpush1.msra.mxu0 %v159
    %202 = vmatprep.subr.mxu0 0.0
    %203 = vmatpush1.msra.mxu0 %v158
    %204 = vmatprep.subr.mxu0 0.0
    %205 = vmatpush1.msra.mxu0 %v157
    %206 = vmatprep.subr.mxu0 0.0
    %207 = vmatpush1.msra.mxu0 %v156
    %208 = vmatprep.subr.mxu0 0.0
    %209 = vmatpush1.msra.mxu0 %v155
    %210 = vmatprep.subr.mxu0 0.0
    %211 = vmatpush2.msra.mxu0 0.0
    %212 = vmatprep.subr.mxu0 0.0
    %213 = vmatpush2.msra.mxu0 0.0
    %214 = vmatprep.subr.mxu0 0.0
    %215 = vmatpush2.msra.mxu0 0.0
    %216 = vmatprep.subr.mxu0 0.0
    %217 = vmatpush2.msra.mxu0 0.0
    %218 = vmatprep.subr.mxu0 0.0
    %219 = vmatpush2.msra.mxu0 0.0
    %220 = vmatprep.subr.mxu0 0.0
    %221 = vmatpush2.msra.mxu0 0.0
    %222 = vmatprep.subr.mxu0 0.0
    %223 = vmatpush2.msra.mxu0 0.0
    %224 = vmatprep.subr.mxu0 0.0
    %225 = vmatpush2.msra.mxu0 0.0
    %226 = vmatprep.subr.mxu0 0.0
    %227 = vmatpush2.msra.mxu0 0.0
    %228 = vmatprep.subr.mxu0 0.0
    %229 = vmatpush2.msra.mxu0 0.0
    %230 = vmatprep.subr.mxu0 0.0
    %231 = vmatpush2.msra.mxu0 0.0
    %232 = vmatprep.subr.mxu0 0.0
    %233 = vmatpush2.msra.mxu0 0.0
    %234 = vmatprep.subr.mxu0 0.0
    %235 = vmatpush2.msra.mxu0 0.0
    %236 = vmatprep.subr.mxu0 0.0
    %237 = vmatpush2.msra.mxu0 0.0
    %238 = vmatprep.subr.mxu0 0.0
    %239 = vmatpush2.msra.mxu0 0.0
    %240 = vmatprep.subr.mxu0 0.0
    %241 = vmatpush2.msra.mxu0 0.0
    %242 = vmatprep.mubr.f32.mxu0 0.0
    %243 = vmatmul.mubr.f32.gmra.mxu0 %v154
    %v244 = vpop.f32.mrf.mxu0
    %v245 = vadd.f32 %v176, %v244
    %v246 = vpop.f32.mrf.mxu0
    %247 = vdwg.mxu0
    %248 = vmax.xlane.f32.xlu0 %v245
    %v249 = vpop.xlane.xlu0 %248
    %v250 = vsub.f32 %v245, %v249
    %v251 = vmul.f32 %v250, 1.442695
    %v252 = vpow.pop %v251
    %253 = vadd.xlane.f32.xlu0 %v252
    %v254 = vpop.xlane.xlu0 %253
    %v255 = vlog2.pop %v254
    %v256 = vmul.f32 %v255, 0.6931472
    %v257 = vsub.f32 %v250, %v256
    %vm258 = vcmask 64512
    %259 = vst.msk [vmem:[#allocation8] sm:$0xff] %vm258, %v257
    // Predicated region
    $region34: #{feedforward_pallas.1} parent=1 // pred_check
      _
    $region35: #{feedforward_pallas.1} parent=1 // pred_check_branch
      %261 = sbr.rel (0) target = $region37
    $region36: #{feedforward_pallas.1} parent=1 // pred_region
      %s263 = ssub.s32 128, 128
      %264 = vsyncadd [#allocation4], %s263
      %s266 = sshll.u32 [#allocation8], 4
      %s267 = int_to_ptr.vmem [resolvable:$true] %s266
      %269 = dma.vmem_to_hbm [thread:$0]  %s267, 128, %s5, [#allocation4]
    $region37: #{feedforward_pallas.1} parent=1 // pred_fallthru
      _
    // Predicated region
    $region38: #{feedforward_pallas.1} parent=1 // pred_check
      _
    $region39: #{feedforward_pallas.1} parent=1 // pred_check_branch
      %271 = sbr.rel (0) target = $region41
    $region40: #{feedforward_pallas.1} parent=1 // pred_region
      %272 = dma.done [#allocation4], 128
    $region41: #{feedforward_pallas.1} parent=1 // pred_fallthru
      _
    %273 = vsyncpa [#allocation3], 1
    %274 = vsyncpa [#allocation6], 1
    %275 = vsyncpa [#allocation4], 1

</llo_original>
